<compile_context>
chip_gen: v6e
topology: v6e:2x2x1
jax: 0.10.0
libtpu: 0.0.40
codegen_flags: <defaults>
</compile_context>

<pallas_src>
import math

import jax
import jax.numpy as jnp
from jax.experimental import pallas as pl
from jax.experimental.pallas import tpu as pltpu

LANE = 128
B_CHUNK_MAX = 16   # rows of the reduced axis per grid step (grow this before TILE_N)


def _input_block_budget_bytes():
    """Per-buffer input-block budget, keyed off the TPU generation."""
    try:
        kind = jax.devices()[0].device_kind.lower()
    except Exception:
        kind = ""
    if ("v6" in kind) or ("v7" in kind):
        # 32 MiB default scoped VMEM: ~8 MiB blocks -> ~17 MiB working set.
        return 8 * 1024 * 1024
    # v5e (16 MiB default scoped VMEM) and unknown chips: stay conservative.
    return 4 * 1024 * 1024


def _pick_tile_n(N, b_chunk, itemsize):
    """Lane-dense tile size along the flattened non-reduced axis."""
    n_lanes = pl.cdiv(N, LANE)
    if n_lanes == 1:
        return N                                   # full-extent tiny block
    budget = _input_block_budget_bytes()
    tile_lanes = max(1, budget // (b_chunk * itemsize * LANE))
    tile_lanes = min(tile_lanes, n_lanes)
    # Keep >= 2 blocks on the parallel grid axis so both TCs run (v7x megacore).
    if tile_lanes >= n_lanes:
        tile_lanes = pl.cdiv(n_lanes, 2)
    return tile_lanes * LANE


def _build_kernel(b_chunk, num_k, b_rem, use_scratch):
    """num_k = #B-chunks; b_rem = valid rows in the last (partial) chunk (0 if exact)."""

    def kernel(x_ref, o_ref, *scratch_refs):
        acc_ref = scratch_refs[0] if use_scratch else o_ref
        k = pl.program_id(1)                       # reduction (B-chunk) axis, innermost

        # Running product of (1 - x_b) over the rows of this chunk: pure VPU
        # vsub/vmul chain, no full-chunk temporary, no XLU reduction.
        p = None
        for b in range(b_chunk):
            om = 1.0 - x_ref[pl.ds(b, 1), :].astype(jnp.float32)
            if b_rem and b >= b_rem:
                # Row is past the true B on the (single) partial chunk: use the
                # multiplicative identity so garbage rows cannot corrupt the product.
                om = jnp.where(k < num_k - 1, om, jnp.ones_like(om))
            p = om if p is None else p * om

        if num_k == 1:
            # Single reduction step: write the result directly, no accumulator passes.
            o_ref[...] = (1.0 - p).astype(o_ref.dtype)
        else:
            @pl.when(k == 0)
            def _first():
                acc_ref[...] = p.astype(acc_ref.dtype)

            @pl.when(k > 0)
            def _accumulate():
                acc_ref[...] = acc_ref[...] * p.astype(acc_ref.dtype)

            @pl.when(k == num_k - 1)
            def _finish():
                o_ref[...] = (1.0 - acc_ref[...].astype(jnp.float32)).astype(o_ref.dtype)

    return kernel


def noisy_or(x, dim=0):
    """y = 1 - prod(1 - x, axis=dim); matches NoisyOr.forward (dims=0)."""
    if dim != 0:
        # TODO(synk): for non-leading reduction dims, chunk the reduced axis via the
        # BlockSpec index_map on the original layout instead of this physical copy.
        x = jnp.moveaxis(x, dim, 0)

    B = x.shape[0]
    rest = x.shape[1:]
    N = math.prod(rest)
    if B == 0 or N == 0:
        return jnp.zeros(rest, x.dtype)            # empty product == 1 -> 1 - 1 = 0

    x2 = x.reshape(B, N)                           # free view, no HBM copy

    b_chunk = B if B <= B_CHUNK_MAX else B_CHUNK_MAX
    num_k = pl.cdiv(B, b_chunk)
    b_rem = B % b_chunk                            # >0 only when num_k > 1

    itemsize = jnp.dtype(x.dtype).itemsize
    tile_n = _pick_tile_n(N, b_chunk, itemsize)
    grid = (pl.cdiv(N, tile_n), num_k)             # reduction axis last

    # f32 inputs accumulate directly in the resident output block; sub-f32
    # inputs accumulate in a f32 VMEM scratch for precision.
    use_scratch = jnp.dtype(x.dtype) != jnp.dtype(jnp.float32)
    scratch_shapes = [pltpu.VMEM((1, tile_n), jnp.float32)] if use_scratch else []

    cost = pl.CostEstimate(
        flops=2 * B * N,                           # one sub + one mul per element
        transcendentals=0,
        bytes_accessed=(B * N + N) * itemsize,
    )

    out2 = pl.pallas_call(
        _build_kernel(b_chunk, num_k, b_rem, use_scratch),
        out_shape=jax.ShapeDtypeStruct((1, N), x.dtype),
        grid_spec=pltpu.PrefetchScalarGridSpec(
            num_scalar_prefetch=0,
            grid=grid,
            in_specs=[pl.BlockSpec((b_chunk, tile_n), lambda j, k: (k, j))],
            out_specs=pl.BlockSpec((1, tile_n), lambda j, k: (0, j)),
            scratch_shapes=scratch_shapes,
        ),
        compiler_params=pltpu.CompilerParams(
            dimension_semantics=("parallel", "arbitrary"),
        ),
        cost_estimate=cost,
    )(x2)

    return out2.reshape(rest)


if __name__ == "__main__":
    key = jax.random.PRNGKey(0)

    # --- main check: module-sized input, f32, direct o_ref accumulation ------
    B, C, H, W = 2, 4, 16, 16
    x = jax.random.uniform(key, (B, C, H, W), dtype=jnp.float32)
    y = jax.block_until_ready(noisy_or(x))
    y_ref = 1.0 - jnp.prod(1.0 - x, axis=0)
    assert y.shape == (C, H, W)
    assert jnp.allclose(y, y_ref, atol=1e-6, rtol=1e-6)

    # --- ragged shapes: N % 128 != 0 and B % b_chunk != 0 (in-kernel masking) -
    xb = jax.random.uniform(jax.random.PRNGKey(1), (20, 3, 7, 11), dtype=jnp.float32)
    yb = jax.block_until_ready(noisy_or(xb))
    yb_ref = 1.0 - jnp.prod(1.0 - xb, axis=0)
    assert yb.shape == (3, 7, 11)
    assert jnp.allclose(yb, yb_ref, atol=1e-6, rtol=1e-6)

    # --- sub-f32 input: f32 VMEM-scratch accumulation path --------------------
    xh = xb.astype(jnp.bfloat16)
    yh = jax.block_until_ready(noisy_or(xh))
    yh_ref = (1.0 - jnp.prod(1.0 - xh.astype(jnp.float32), axis=0)).astype(jnp.bfloat16)
    assert yh.dtype == jnp.bfloat16
    assert jnp.allclose(yh.astype(jnp.float32), yh_ref.astype(jnp.float32),
                        atol=1e-2, rtol=1e-2)

    print("KERNEL_OK")
</pallas_src>

<mosaic_0001>
module attributes {stable_mosaic.version = 11 : i64} {
  func.func @kernel(%arg0: i32, %arg1: i32, %arg2: memref<2x512xf32, #tpu.memory_space<vmem>>, %arg3: memref<1x512xf32, #tpu.memory_space<vmem>>) attributes {dimension_semantics = [#tpu.dimension_semantics<parallel>, #tpu.dimension_semantics<arbitrary>], iteration_bounds = array<i64: 2, 1>, scalar_prefetch = 0 : i64, scratch_operands = 0 : i64, tpu.core_type = #tpu.core_type<tc>, window_params = [{transform_indices = @transform_0, window_bounds = array<i64: 2, 512>}, {transform_indices = @transform_1, window_bounds = array<i64: 1, 512>}]} {
    %c0 = arith.constant 0 : index
    %c0_0 = arith.constant 0 : index
    %0 = vector.load %arg2[%c0, %c0_0] : memref<2x512xf32, #tpu.memory_space<vmem>>, vector<1x512xf32>
    %cst = arith.constant 1.000000e+00 : f32
    %1 = vector.broadcast %cst : f32 to vector<1x512xf32>
    %2 = arith.subf %1, %0 : vector<1x512xf32>
    %c1 = arith.constant 1 : index
    %c0_1 = arith.constant 0 : index
    %3 = vector.load %arg2[%c1, %c0_1] : memref<2x512xf32, #tpu.memory_space<vmem>>, vector<1x512xf32>
    %cst_2 = arith.constant 1.000000e+00 : f32
    %4 = vector.broadcast %cst_2 : f32 to vector<1x512xf32>
    %5 = arith.subf %4, %3 : vector<1x512xf32>
    %6 = arith.mulf %2, %5 : vector<1x512xf32>
    %cst_3 = arith.constant 1.000000e+00 : f32
    %7 = vector.broadcast %cst_3 : f32 to vector<1x512xf32>
    %8 = arith.subf %7, %6 : vector<1x512xf32>
    %c0_4 = arith.constant 0 : index
    %c0_5 = arith.constant 0 : index
    %9 = vector.load %arg3[%c0_4, %c0_5] : memref<1x512xf32, #tpu.memory_space<vmem>>, vector<1x512xf32>
    tpu.vector_store %arg3[%c0_4, %c0_5], %8 {strides = array<i32>} : memref<1x512xf32, #tpu.memory_space<vmem>>, vector<1x512xf32>,
    return
  }
  func.func @transform_0(%arg0: i32, %arg1: i32) -> (i32, i32) {
    %c0_i32 = arith.constant 0 : i32
    return %arg1, %arg0 : i32, i32
  }
  func.func @transform_1(%arg0: i32, %arg1: i32) -> (i32, i32) {
    %c0_i32 = arith.constant 0 : i32
    %c0_i32_0 = arith.constant 0 : i32
    return %c0_i32, %arg0 : i32, i32
  }
}

</mosaic_0001>

<llo_original>
// kernel: tpu_custom_call.1
$region0: #{tpu_custom_call.1}
  #allocation0 [shape = 'u32[]', space=smem, size = 0x4, offset = 0x4, fixed_abs, tag = 'smem constant byte address 0x4 - core index']
  #allocation1 [shape = 'u32[144,128]{1,0:T(1,128)}', space=vmem, size = 0x12000, scoped, tag = 'internal scratch']
  %s0 = inlined_call_operand.hbm [shape: f32[2,1024], index: 0, kind: input, shape index: {}]
  %s1 = inlined_call_operand.hbm [shape: f32[1,1024], index: 1, kind: output, shape index: {}]
  %s2 = sld [smem:[#allocation0]]
  $region41: #{tpu_custom_call.1} parent=0
    _
  %s4 = ssub.s32 1, %s2
  %s5 = scalar_select 0, %s4, %s2
  $region1: #{tpu_custom_call.1} parent=0
    #allocation2 [shape = 'u8[8192]{0}', space=vmem, size = 0x2000, scoped, tag = 'input window, operand 0']
    #allocation3 [shape = 's32[2]{0}', space=sflag, size = 0x8, scoped, tag = 'scoped memory for tpu_custom_call.1']
    #allocation4 [shape = 's32[2]{0}', space=sflag, size = 0x8, scoped, tag = 'scoped memory for tpu_custom_call.1']
    #allocation5 [shape = 'u8[4096]{0}', space=vmem, size = 0x1000, scoped, tag = 'output window, operand 0']
    %6 = vsyncpa [#allocation3], 0
    %s7 = scalar_lea.sflag [#allocation3], 1
    %8 = vsyncpa %s7, 0
    %9 = vsyncpa [#allocation4], 0
    %s10 = scalar_lea.sflag [#allocation4], 1
    %11 = vsyncpa %s10, 0
    loop: start=0, step=1, limit=4
    $region2: #{tpu_custom_call.1} parent=1 // loop_pre_header
      _
    $region3: #{tpu_custom_call.1} parent=1 // loop_header
      %s13 = sphi 0, %s17
      %p14 = scmp.ge.s32.totalorder %s13, 4
      %s20 = sphi 0, %s32
      %s21 = sphi 0, %s28
      %s22 = sphi 0, %s20
      %s23 = sphi 0, %s21
      %s24 = sphi 0, %s22
      %s25 = sphi 0, %s23
      %s37 = sphi 0, %s39
      %s40 = sphi 0, %s37
      %s41 = sphi 0, %s40
      %s57 = sphi 0, %s41
      %s63 = sphi 0, %s65
      %s66 = sphi 0, %s63
      %s67 = sphi 0, %s66
      %s83 = sphi 0, %s67
    $region4: #{tpu_custom_call.1} parent=1 // loop_header_branch
      %16 = sbr.rel (%p14) target = $region8
    $region5: #{tpu_custom_call.1} parent=1 // loop_body
      %s18 = ssub.s32 %s13, 1
      %s19 = ssub.s32 %s13, 2
      %s26 = sadd.s32 1, %s21
      %p27 = scmp.ge.s32.totalorder %s26, 1
      %s28 = scalar_select %p27, 0, %s26
      %s29 = sadd.s32 1, %s20
      %s30 = scalar_select %p27, %s29, %s20
      %p31 = scmp.ge.s32.totalorder %s30, 2
      %s32 = scalar_select %p31, 0, %s30
      %s33 = ssub.s32 %s21, %s28
      %s34 = ssub.s32 %s20, %s32
      %s35 = sor.u32 %s33, %s34
      %p36 = scmp.eq.s32.totalorder %s35, 0
      %s38 = sadd.s32 %s37, 1
      %s39 = scalar_select %p36, %s37, %s38
      %p42 = pneg %p36
      %p43 = scmp.eq.s32.totalorder %s13, 1
      %p44 = por %p42, %p43
      %p45 = scmp.ne.s32.totalorder %s37, %s40
      %p46 = scmp.eq.s32.totalorder %s13, 0
      %p47 = por %p45, %p46
      %p48 = scmp.ne.s32.totalorder %s37, %s40
      %p49 = scmp.eq.s32.totalorder %s18, 1
      %p50 = por %p48, %p49
      %p51 = scmp.ne.s32.totalorder %s40, %s41
      %p52 = scmp.eq.s32.totalorder %s18, 0
      %p53 = por %p51, %p52
      %p54 = scmp.ne.s32.totalorder %s40, %s41
      %p55 = scmp.eq.s32.totalorder %s19, 1
      %p56 = por %p54, %p55
      %p58 = scmp.ne.s32.totalorder %s41, %s57
      %p59 = scmp.eq.s32.totalorder %s19, 0
      %p60 = por %p58, %p59
      %s61 = ssub.s32 %s20, %s32
      %p62 = scmp.eq.s32.totalorder %s61, 0
      %s64 = sadd.s32 %s63, 1
      %s65 = scalar_select %p62, %s63, %s64
      %p68 = pneg %p62
      %p69 = scmp.eq.s32.totalorder %s13, 1
      %p70 = por %p68, %p69
      %p71 = scmp.ne.s32.totalorder %s63, %s66
      %p72 = scmp.eq.s32.totalorder %s13, 0
      %p73 = por %p71, %p72
      %p74 = scmp.ne.s32.totalorder %s63, %s66
      %p75 = scmp.eq.s32.totalorder %s18, 1
      %p76 = por %p74, %p75
      %p77 = scmp.ne.s32.totalorder %s66, %s67
      %p78 = scmp.eq.s32.totalorder %s18, 0
      %p79 = por %p77, %p78
      %p80 = scmp.ne.s32.totalorder %s66, %s67
      %p81 = scmp.eq.s32.totalorder %s19, 1
      %p82 = por %p80, %p81
      %p84 = scmp.ne.s32.totalorder %s67, %s83
      %p85 = scmp.eq.s32.totalorder %s19, 0
      %p86 = por %p84, %p85
      %p87 = scmp.le.s32.totalorder 1, %s13
      %p88 = scmp.lt.s32.totalorder %s13, 3
      %p89 = pnand %p87, %p88
      %p90 = pneg %p89
      // Predicated region
      $region9: #{tpu_custom_call.1} parent=5 // pred_check
        _
      $region10: #{tpu_custom_call.1} parent=5 // pred_check_branch
        %92 = sbr.rel (%p89) target = $region12
      $region11: #{tpu_custom_call.1} parent=5 // pred_region
        %s93 = ssub.s32 %s13, 1
      $region12: #{tpu_custom_call.1} parent=5 // pred_fallthru
        _
      %p94 = scmp.lt.s32.totalorder %s13, 2
      // Predicated region
      $region13: #{tpu_custom_call.1} parent=5 // pred_check
        %p95 = pneg %p94
      $region14: #{tpu_custom_call.1} parent=5 // pred_check_branch
        %97 = sbr.rel (%p95) target = $region16
      $region15: #{tpu_custom_call.1} parent=5 // pred_region
        // Predicated region
        $region17: #{tpu_custom_call.1} parent=15 // pred_check
          %p98 = pneg %p47
        $region18: #{tpu_custom_call.1} parent=15 // pred_check_branch
          %100 = sbr.rel (%p98) target = $region20
        $region19: #{tpu_custom_call.1} parent=15 // pred_region
          %s101 = sand.u32 %s37, 1
          %s102 = scalar_lea.sflag [#allocation3], %s101
          %s103 = sand.u32 %s37, 1
          %s104 = smul.addr %s103, 8
          %s105 = scalar_lea.vmem [#allocation2], %s104
          %s106 = smul.u32 4, %s20
          %s108 = ssub.s32 128, 128
          %109 = vsyncadd %s102, %s108
          %s110 = smul.addr %s21, 8
          %s111 = sadd.s32 %s106, %s110
          %s112 = smul.addr %s111, 32
          %s113 = scalar_lea.hbm %s0, %s112
          %s115 = sshll.u32 %s105, 4
          %s116 = int_to_ptr.vmem [resolvable:$true] %s115
          %118 = dma.hbm_to_vmem [thread:$0]  %s113, 128, %s116, %s102
        $region20: #{tpu_custom_call.1} parent=15 // pred_fallthru
          _
      $region16: #{tpu_custom_call.1} parent=5 // pred_fallthru
        _
      %p119 = scmp.le.s32.totalorder 1, %s13
      %p120 = scmp.lt.s32.totalorder %s13, 3
      %p121 = pnand %p119, %p120
      %p122 = pneg %p121
      // Predicated region
      $region21: #{tpu_custom_call.1} parent=5 // pred_check
        _
      $region22: #{tpu_custom_call.1} parent=5 // pred_check_branch
        %124 = sbr.rel (%p121) target = $region24
      $region23: #{tpu_custom_call.1} parent=5 // pred_region
        %s125 = ssub.s32 %s13, 1
        %s126 = sand.u32 %s40, 1
        %s127 = scalar_lea.sflag [#allocation3], %s126
        %s128 = sand.u32 %s40, 1
        %s129 = smul.addr %s128, 8
        %s130 = scalar_lea.vmem [#allocation2], %s129
        // Predicated region
        $region25: #{tpu_custom_call.1} parent=23 // pred_check
          %p131 = pneg %p53
        $region26: #{tpu_custom_call.1} parent=23 // pred_check_branch
          %133 = sbr.rel (%p131) target = $region28
        $region27: #{tpu_custom_call.1} parent=23 // pred_region
          %134 = dma.done %s127, 128
        $region28: #{tpu_custom_call.1} parent=23 // pred_fallthru
          _
        %s135 = sand.u32 %s40, 1
        %s136 = scalar_lea.sflag [#allocation3], %s135
        %s137 = sand.u32 %s40, 1
        %s138 = smul.addr %s137, 8
        %s139 = scalar_lea.vmem [#allocation2], %s138
        %p140 = pneg %p53
        %p141 = pneg %p50
        %p142 = pneg %p79
        %p143 = pneg %p76
        %s144 = sand.u32 %s66, 1
        %s145 = scalar_lea.sflag [#allocation4], %s144
        %s146 = sand.u32 %s66, 1
        %s147 = smul.addr %s146, 4
        %s148 = scalar_lea.vmem [#allocation5], %s147
        %s149 = smul.u32 4, %s22
        %s150 = smul.u32 4, %s22
        %v151 = vld [vmem:[%s130] ss:$2 sm:$0xf]
        %v152 = vsub.f32 1.0, %v151
        %s153 = scalar_lea.vmem %s130, 1 [#allocation2]
        %v154 = vld [vmem:[%s153] ss:$2 sm:$0xf]
        %v155 = vsub.f32 1.0, %v154
        %v156 = vmul.f32 %v152, %v155
        %v157 = vsub.f32 1.0, %v156
        %v158 = vlaneseq
        %vm159 = vcmp.ge.s32.totalorder %v158, 0
        %vm160 = vcmp.lt.s32.totalorder %v158, 512
        %vm161 = vmand %vm159, %vm160
        %162 = vst.msk [vmem:[%s148] sm:$0xf] %vm161, %v157
        %s163 = sand.u32 %s66, 1
        %s164 = scalar_lea.sflag [#allocation4], %s163
        %s165 = sand.u32 %s66, 1
        %s166 = smul.addr %s165, 4
        %s167 = scalar_lea.vmem [#allocation5], %s166
        // Predicated region
        $region29: #{tpu_custom_call.1} parent=23 // pred_check
          %p168 = pneg %p76
        $region30: #{tpu_custom_call.1} parent=23 // pred_check_branch
          %170 = sbr.rel (%p168) target = $region32
        $region31: #{tpu_custom_call.1} parent=23 // pred_region
          %s171 = smul.u32 4, %s22
          %s173 = ssub.s32 64, 64
          %174 = vsyncadd %s164, %s173
          %s175 = smul.addr %s171, 16
          %s176 = scalar_lea.hbm %s1, %s175
          %s178 = sshll.u32 %s167, 4
          %s179 = int_to_ptr.vmem [resolvable:$true] %s178
          %181 = dma.vmem_to_hbm [thread:$0]  %s179, 64, %s176, %s164
        $region32: #{tpu_custom_call.1} parent=23 // pred_fallthru
          _
      $region24: #{tpu_custom_call.1} parent=5 // pred_fallthru
        _
      %p182 = scmp.le.s32.totalorder 2, %s13
      // Predicated region
      $region33: #{tpu_custom_call.1} parent=5 // pred_check
        %p183 = pneg %p182
      $region34: #{tpu_custom_call.1} parent=5 // pred_check_branch
        %185 = sbr.rel (%p183) target = $region36
      $region35: #{tpu_custom_call.1} parent=5 // pred_region
        %s186 = ssub.s32 %s13, 2
        // Predicated region
        $region37: #{tpu_custom_call.1} parent=35 // pred_check
          %p187 = pneg %p82
        $region38: #{tpu_custom_call.1} parent=35 // pred_check_branch
          %189 = sbr.rel (%p187) target = $region40
        $region39: #{tpu_custom_call.1} parent=35 // pred_region
          %s190 = sand.u32 %s67, 1
          %s191 = scalar_lea.sflag [#allocation4], %s190
          %s192 = sand.u32 %s67, 1
          %s193 = smul.addr %s192, 4
          %s194 = scalar_lea.vmem [#allocation5], %s193
          %195 = dma.done %s191, 64
        $region40: #{tpu_custom_call.1} parent=35 // pred_fallthru
          _
      $region36: #{tpu_custom_call.1} parent=5 // pred_fallthru
        _
    $region6: #{tpu_custom_call.1} parent=1 // loop_footer
      %s17 = sadd.s32 1, %s13
    $region7: #{tpu_custom_call.1} parent=1 // loop_footer_branch
      %12 = sbr.rel target = $region3
    $region8: #{tpu_custom_call.1} parent=1 // loop_exit
      _
    %196 = vsyncpa [#allocation3], 1
    %s197 = scalar_lea.sflag [#allocation3], 1
    %198 = vsyncpa %s197, 1
    %199 = vsyncpa [#allocation4], 1
    %s200 = scalar_lea.sflag [#allocation4], 1
    %201 = vsyncpa %s200, 1

</llo_original>
